<compile_context>
chip_gen: v5e
topology: v5e:2x2
jax: 0.10.0
libtpu: 0.0.40
codegen_flags: <defaults>
</compile_context>

<pallas_src>
import jax
import jax.numpy as jnp
import numpy as np
from jax.experimental import pallas as pl
from jax.experimental.pallas import tpu as pltpu


# ----------------------------------------------------------------------------
# Pallas kernel: one (channels, spatial_tile) slab per grid step.
#   acc = Wg^T @ g + Wx^T @ x        (MXU, bf16 operands, f32 accumulate)
#   a   = relu(acc + (bg + bx))                          (F_int, T) f32
#   psi = sigmoid(sum_f wpsi[f] * a[f, :] + bpsi)        (1, T)     VPU + XLU
#   out = x * psi                                        (F_l, T)   lane-dense
# ----------------------------------------------------------------------------
def attention_kernel(g_ref, x_ref, wg_ref, wx_ref, b_ref, wpsi_ref, bpsi_ref,
                     out_ref):
    # Load each streamed tile exactly once (Ref reads are not CSE'd).
    xv = x_ref[...]                                    # (F_l, T) native dtype
    gv = g_ref[...]                                    # (F_g, T)

    # In-kernel bf16 cast (no wrapper-side cast pass / extra HBM round trip).
    # Single expression so Mosaic can accumulate the second matmul into the
    # MXU result buffer on v7x; f32 accumulation everywhere.
    acc = (jnp.dot(wg_ref[...], gv.astype(jnp.bfloat16),
                   preferred_element_type=jnp.float32)
           + jnp.dot(wx_ref[...], xv.astype(jnp.bfloat16),
                     preferred_element_type=jnp.float32))
    a = jnp.maximum(acc + b_ref[...], 0.0)             # (F_int, T) f32

    # psi projection: degenerate (F_int -> 1) conv as VPU mul + XLU reduce
    # (avoids a 1-output-column MXU matmul; both units have slack here).
    logit = jnp.sum(a * wpsi_ref[...], axis=0, keepdims=True) + bpsi_ref[...]
    psi = jax.nn.sigmoid(logit)                        # (1, T) f32

    # Gate with the full-precision streamed x; narrow only at the final store.
    out_ref[...] = (xv.astype(jnp.float32) * psi).astype(out_ref.dtype)


# ----------------------------------------------------------------------------
# Generation-aware VMEM budget + spatial tile selection
# ----------------------------------------------------------------------------
def _vmem_budget_bytes():
    """~3/4 of physical VMEM: ~48 MiB on v7x, ~96 MiB on v5e/v6e."""
    cap = 128 * 2**20
    try:
        info = pltpu.get_tpu_info()
        cap = int(getattr(info, "vmem_capacity_bytes", cap))
    except Exception:
        pass
    return max(32 * 2**20, (cap * 3) // 4)


def _pick_spatial_tile(S, N, footprint_fn, budget, max_tile):
    """Largest 128-multiple tile that fits the VMEM budget; >=2 grid steps."""
    s_pad = -(-S // 128) * 128
    t = 128
    for cand in (8192, 4096, 2048, 1024, 512, 256, 128):
        if cand > max_tile or cand > s_pad:
            continue
        if footprint_fn(cand) > budget:
            continue
        t = cand
        break
    # Keep >=2 grid steps so both v7x TensorCores (megacore) get work.
    while t > 128 and N * (-(-S // t)) < 2:
        t //= 2
    return t


# ----------------------------------------------------------------------------
# pallas_call wrapper over (N, C, S) slabs
# ----------------------------------------------------------------------------
def attention_block_pallas(g3, x3, wgT, wxT, b_sum, wpsi, bpsi, *, out_dtype,
                           max_tile=8192, stream_buffers=2):
    """g3: (N, F_g, S), x3: (N, F_l, S); weights already BN-folded/transposed."""
    N, F_g, S = g3.shape
    _, F_l, _ = x3.shape
    F_int = wgT.shape[0]

    budget = _vmem_budget_bytes()
    in_b = g3.dtype.itemsize
    out_b = jnp.dtype(out_dtype).itemsize

    def footprint(t):
        streams = stream_buffers * (F_g + F_l) * t * in_b     # pipelined g/x
        outs = 2 * F_l * t * out_b                            # double-buf out
        live = (2 * F_int * t * 4                             # acc / a (f32)
                + (F_g + F_l) * t * 2                         # bf16 dot casts
                + F_l * t * 4)                                # xv live for gate
        resident = F_int * (F_g + F_l) * 2 + (2 * F_int + 4) * 4
        return int(1.25 * (streams + outs + live)) + resident

    t = _pick_spatial_tile(S, N, footprint, budget, max_tile)
    grid = (N, -(-S // t))            # cdiv; ragged last block is masked

    def row(c):
        kw = {}
        if stream_buffers > 2:        # opt-in deeper pipelining for g/x streams
            kw["pipeline_mode"] = pl.Buffered(stream_buffers)
        return pl.BlockSpec((None, c, t), lambda n, s: (n, 0, s), **kw)

    resident = pl.BlockSpec(memory_space=pltpu.MemorySpace.VMEM)

    return pl.pallas_call(
        attention_kernel,
        out_shape=jax.ShapeDtypeStruct((N, F_l, S), out_dtype),
        grid_spec=pltpu.PrefetchScalarGridSpec(
            num_scalar_prefetch=0,
            grid=grid,
            in_specs=[
                row(F_g),        # g slab  (F_g, t)  streamed
                row(F_l),        # x slab  (F_l, t)  streamed
                resident,        # Wg^T    (F_int, F_g) bf16, VMEM-resident
                resident,        # Wx^T    (F_int, F_l) bf16
                resident,        # bg+bx   (F_int, 1)   f32
                resident,        # wpsi    (F_int, 1)   f32
                resident,        # bpsi    (1, 1)       f32
            ],
            out_specs=pl.BlockSpec((None, F_l, t), lambda n, s: (n, 0, s)),
        ),
        compiler_params=pltpu.CompilerParams(
            dimension_semantics=("parallel", "parallel"),
            vmem_limit_bytes=budget),
    )(g3, x3, wgT, wxT, b_sum, wpsi, bpsi)


# ----------------------------------------------------------------------------
# Glue: BatchNorm folding + parameter init + NCHW <-> (N, C, H*W) views
# ----------------------------------------------------------------------------
def fold_conv_bn(w, b, gamma, beta, mean, var, eps=1e-5):
    """Fold eval-mode BN into a 1x1 conv. w: (Cin, Cout), b: (Cout,)."""
    scale = gamma / jnp.sqrt(var + eps)                   # (Cout,)
    w_eff = w * scale[None, :]
    b_eff = (b - mean) * scale + beta
    return w_eff.astype(jnp.float32), b_eff.astype(jnp.float32)


def make_params(key, F_g, F_l, F_int):
    ks = jax.random.split(key, 12)
    p = {}
    # conv weights stored as (Cin, Cout) since 1x1 conv == matmul
    p["wg_w"] = jax.random.normal(ks[0], (F_g, F_int), jnp.float32) * 0.2
    p["wg_b"] = jax.random.normal(ks[1], (F_int,), jnp.float32) * 0.1
    p["wx_w"] = jax.random.normal(ks[2], (F_l, F_int), jnp.float32) * 0.2
    p["wx_b"] = jax.random.normal(ks[3], (F_int,), jnp.float32) * 0.1
    p["psi_w"] = jax.random.normal(ks[4], (F_int, 1), jnp.float32) * 0.2
    p["psi_b"] = jax.random.normal(ks[5], (1,), jnp.float32) * 0.1

    def bn(k, c):
        k1, k2, k3 = jax.random.split(k, 3)
        gamma = 1.0 + 0.1 * jax.random.normal(k1, (c,), jnp.float32)
        beta = 0.1 * jax.random.normal(k2, (c,), jnp.float32)
        mean = 0.1 * jax.random.normal(k3, (c,), jnp.float32)
        var = jnp.ones((c,), jnp.float32)
        return gamma, beta, mean, var

    p["bn_g"] = bn(ks[6], F_int)
    p["bn_x"] = bn(ks[7], F_int)
    p["bn_psi"] = bn(ks[8], 1)
    return p


def attention_block(g_nchw, x_nchw, params, *, out_dtype=jnp.bfloat16,
                    max_tile=8192, stream_buffers=2):
    """out_dtype=jnp.bfloat16 halves output HBM traffic (kernel is HBM-bound);
    pass out_dtype=jnp.float32 for exact dtype parity with the PyTorch module."""
    N, F_g, H, W = g_nchw.shape
    _, F_l, _, _ = x_nchw.shape
    F_int = params["wg_w"].shape[1]

    wg, bg = fold_conv_bn(params["wg_w"], params["wg_b"], *params["bn_g"])
    wx, bx = fold_conv_bn(params["wx_w"], params["wx_b"], *params["bn_x"])
    wpsi, bpsi = fold_conv_bn(params["psi_w"], params["psi_b"], *params["bn_psi"])

    # NCHW -> (N, C, H*W): free reshape (no transpose); spatial = lane axis.
    # No dtype cast here: g/x stream into the kernel in their native dtype
    # (single HBM read) and are cast to bf16 in-kernel before the MXU dots.
    g3 = g_nchw.reshape(N, F_g, H * W)
    x3 = x_nchw.reshape(N, F_l, H * W)

    out3 = attention_block_pallas(
        g3, x3,
        wg.T.astype(jnp.bfloat16), wx.T.astype(jnp.bfloat16),
        (bg + bx).reshape(F_int, 1),
        wpsi.reshape(F_int, 1), bpsi.reshape(1, 1),
        out_dtype=out_dtype, max_tile=max_tile, stream_buffers=stream_buffers)

    return out3.reshape(N, F_l, H, W)


def attention_block_ref(g_nchw, x_nchw, params, *, out_dtype=jnp.bfloat16):
    """Pure-JAX reference with identical dtype handling (for sanity check)."""
    N, F_g, H, W = g_nchw.shape
    _, F_l, _, _ = x_nchw.shape
    F_int = params["wg_w"].shape[1]

    wg, bg = fold_conv_bn(params["wg_w"], params["wg_b"], *params["bn_g"])
    wx, bx = fold_conv_bn(params["wx_w"], params["wx_b"], *params["bn_x"])
    wpsi, bpsi = fold_conv_bn(params["psi_w"], params["psi_b"], *params["bn_psi"])

    g3 = g_nchw.reshape(N, F_g, H * W)
    x3 = x_nchw.reshape(N, F_l, H * W)

    g1 = jnp.einsum("if,nfs->nis", wg.T.astype(jnp.bfloat16),
                    g3.astype(jnp.bfloat16), preferred_element_type=jnp.float32)
    x1 = jnp.einsum("if,nfs->nis", wx.T.astype(jnp.bfloat16),
                    x3.astype(jnp.bfloat16), preferred_element_type=jnp.float32)
    a = jnp.maximum(g1 + x1 + (bg + bx).reshape(1, F_int, 1), 0.0)
    logit = (jnp.sum(a * wpsi.reshape(1, F_int, 1), axis=1, keepdims=True)
             + bpsi.reshape(1, 1, 1))
    psi = jax.nn.sigmoid(logit)
    out = (x3.astype(jnp.float32) * psi).astype(out_dtype)
    return out.reshape(N, F_l, H, W)


if __name__ == "__main__":
    key = jax.random.PRNGKey(0)
    k_g, k_x, k_p = jax.random.split(key, 3)

    N, F_g, F_l, F_int, H, W = 2, 4, 4, 8, 16, 16
    g = jax.random.normal(k_g, (N, F_g, H, W), jnp.float32)
    x = jax.random.normal(k_x, (N, F_l, H, W), jnp.float32)
    params = make_params(k_p, F_g, F_l, F_int)

    out = jax.block_until_ready(attention_block(g, x, params))
    ref = jax.block_until_ready(attention_block_ref(g, x, params))

    assert out.shape == (N, F_l, H, W)
    assert out.dtype == jnp.bfloat16
    np.testing.assert_allclose(np.asarray(out.astype(jnp.float32)),
                               np.asarray(ref.astype(jnp.float32)),
                               rtol=1e-2, atol=1e-2)
    print("KERNEL_OK")
</pallas_src>

<mosaic_0001>
module attributes {stable_mosaic.version = 11 : i64} {
  func.func @attention_kernel(%arg0: i32, %arg1: i32, %arg2: memref<1x4x256xf32, #tpu.memory_space<vmem>>, %arg3: memref<1x4x256xf32, #tpu.memory_space<vmem>>, %arg4: memref<8x4xbf16, #tpu.memory_space<vmem>>, %arg5: memref<8x4xbf16, #tpu.memory_space<vmem>>, %arg6: memref<8x1xf32, #tpu.memory_space<vmem>>, %arg7: memref<8x1xf32, #tpu.memory_space<vmem>>, %arg8: memref<1x1xf32, #tpu.memory_space<vmem>>, %arg9: memref<1x4x256xbf16, #tpu.memory_space<vmem>>) attributes {dimension_semantics = [#tpu.dimension_semantics<parallel>, #tpu.dimension_semantics<parallel>], iteration_bounds = array<i64: 2, 1>, scalar_prefetch = 0 : i64, scratch_operands = 0 : i64, tpu.core_type = #tpu.core_type<tc>, window_params = [{transform_indices = @transform_0, window_bounds = array<i64: 1, 4, 256>}, {transform_indices = @transform_1, window_bounds = array<i64: 1, 4, 256>}, {pipeline_mode = #tpu.pipeline_mode<synchronous>, transform_indices = @transform_2, window_bounds = array<i64: 8, 4>}, {pipeline_mode = #tpu.pipeline_mode<synchronous>, transform_indices = @transform_3, window_bounds = array<i64: 8, 4>}, {pipeline_mode = #tpu.pipeline_mode<synchronous>, transform_indices = @transform_4, window_bounds = array<i64: 8, 1>}, {pipeline_mode = #tpu.pipeline_mode<synchronous>, transform_indices = @transform_5, window_bounds = array<i64: 8, 1>}, {pipeline_mode = #tpu.pipeline_mode<synchronous>, transform_indices = @transform_6, window_bounds = array<i64: 1, 1>}, {transform_indices = @transform_7, window_bounds = array<i64: 1, 4, 256>}]} {
    %c0 = arith.constant 0 : index
    %c0_0 = arith.constant 0 : index
    %c0_1 = arith.constant 0 : index
    %0 = vector.load %arg3[%c0, %c0_0, %c0_1] : memref<1x4x256xf32, #tpu.memory_space<vmem>>, vector<1x4x256xf32>
    %1 = vector.shape_cast %0 : vector<1x4x256xf32> to vector<4x256xf32>
    %c0_2 = arith.constant 0 : index
    %c0_3 = arith.constant 0 : index
    %c0_4 = arith.constant 0 : index
    %2 = vector.load %arg2[%c0_2, %c0_3, %c0_4] : memref<1x4x256xf32, #tpu.memory_space<vmem>>, vector<1x4x256xf32>
    %3 = vector.shape_cast %2 : vector<1x4x256xf32> to vector<4x256xf32>
    %c0_5 = arith.constant 0 : index
    %c0_6 = arith.constant 0 : index
    %4 = vector.load %arg4[%c0_5, %c0_6] : memref<8x4xbf16, #tpu.memory_space<vmem>>, vector<8x4xbf16>
    %5 = arith.truncf %3 : vector<4x256xf32> to vector<4x256xbf16>
    %cst = arith.constant dense<0.000000e+00> : vector<8x256xf32>
    %6 = tpu.matmul %4, %5, %cst {dimension_numbers = #tpu.dot_dimension_numbers<[1], [0], [0], [1], [0, 0, 1, 1], [], []>} : vector<8x4xbf16>, vector<4x256xbf16>, vector<8x256xf32> -> vector<8x256xf32>
    %c0_7 = arith.constant 0 : index
    %c0_8 = arith.constant 0 : index
    %7 = vector.load %arg5[%c0_7, %c0_8] : memref<8x4xbf16, #tpu.memory_space<vmem>>, vector<8x4xbf16>
    %8 = arith.truncf %1 : vector<4x256xf32> to vector<4x256xbf16>
    %cst_9 = arith.constant dense<0.000000e+00> : vector<8x256xf32>
    %9 = tpu.matmul %7, %8, %cst_9 {dimension_numbers = #tpu.dot_dimension_numbers<[1], [0], [0], [1], [0, 0, 1, 1], [], []>} : vector<8x4xbf16>, vector<4x256xbf16>, vector<8x256xf32> -> vector<8x256xf32>
    %10 = arith.addf %6, %9 : vector<8x256xf32>
    %c0_10 = arith.constant 0 : index
    %c0_11 = arith.constant 0 : index
    %11 = vector.load %arg6[%c0_10, %c0_11] : memref<8x1xf32, #tpu.memory_space<vmem>>, vector<8x1xf32>
    %12 = vector.broadcast %11 : vector<8x1xf32> to vector<8x256xf32>
    %13 = arith.addf %10, %12 : vector<8x256xf32>
    %cst_12 = arith.constant 0.000000e+00 : f32
    %14 = vector.broadcast %cst_12 : f32 to vector<8x256xf32>
    %15 = arith.maximumf %13, %14 : vector<8x256xf32>
    %c0_13 = arith.constant 0 : index
    %c0_14 = arith.constant 0 : index
    %16 = vector.load %arg7[%c0_13, %c0_14] : memref<8x1xf32, #tpu.memory_space<vmem>>, vector<8x1xf32>
    %17 = vector.broadcast %16 : vector<8x1xf32> to vector<8x256xf32>
    %18 = arith.mulf %15, %17 : vector<8x256xf32>
    %cst_15 = arith.constant dense<0.000000e+00> : vector<256xf32>
    %19 = vector.multi_reduction <add>, %18, %cst_15 [0] : vector<8x256xf32> to vector<256xf32>
    %20 = vector.shape_cast %19 : vector<256xf32> to vector<1x256xf32>
    %c0_16 = arith.constant 0 : index
    %c0_17 = arith.constant 0 : index
    %21 = vector.load %arg8[%c0_16, %c0_17] : memref<1x1xf32, #tpu.memory_space<vmem>>, vector<1x1xf32>
    %22 = vector.broadcast %21 : vector<1x1xf32> to vector<1x256xf32>
    %23 = arith.addf %20, %22 : vector<1x256xf32>
    %24 = arith.negf %23 : vector<1x256xf32>
    %25 = math.exp %24 : vector<1x256xf32>
    %cst_18 = arith.constant 1.000000e+00 : f32
    %26 = vector.broadcast %cst_18 : f32 to vector<1x256xf32>
    %27 = arith.addf %26, %25 : vector<1x256xf32>
    %28 = arith.divf %26, %27 : vector<1x256xf32>
    %29 = vector.broadcast %28 : vector<1x256xf32> to vector<4x256xf32>
    %30 = arith.mulf %1, %29 : vector<4x256xf32>
    %31 = arith.truncf %30 : vector<4x256xf32> to vector<4x256xbf16>
    %c0_19 = arith.constant 0 : index
    %c0_20 = arith.constant 0 : index
    %c0_21 = arith.constant 0 : index
    %32 = vector.load %arg9[%c0_19, %c0_20, %c0_21] : memref<1x4x256xbf16, #tpu.memory_space<vmem>>, vector<1x4x256xbf16>
    %33 = vector.shape_cast %32 : vector<1x4x256xbf16> to vector<4x256xbf16>
    %34 = vector.shape_cast %31 : vector<4x256xbf16> to vector<1x4x256xbf16>
    tpu.vector_store %arg9[%c0_19, %c0_20, %c0_21], %34 {strides = array<i32>} : memref<1x4x256xbf16, #tpu.memory_space<vmem>>, vector<1x4x256xbf16>,
    return
  }
  func.func @transform_0(%arg0: i32, %arg1: i32) -> (i32, i32, i32) {
    %c0_i32 = arith.constant 0 : i32
    %c0_i32_0 = arith.constant 0 : i32
    return %arg0, %c0_i32, %arg1 : i32, i32, i32
  }
  func.func @transform_1(%arg0: i32, %arg1: i32) -> (i32, i32, i32) {
    %c0_i32 = arith.constant 0 : i32
    %c0_i32_0 = arith.constant 0 : i32
    return %arg0, %c0_i32, %arg1 : i32, i32, i32
  }
  func.func @transform_2(%arg0: i32, %arg1: i32) -> (i32, i32) {
    %c0_i32 = arith.constant 0 : i32
    %c0_i32_0 = arith.constant 0 : i32
    %c0_i32_1 = arith.constant 0 : i32
    return %c0_i32, %c0_i32_0 : i32, i32
  }
  func.func @transform_3(%arg0: i32, %arg1: i32) -> (i32, i32) {
    %c0_i32 = arith.constant 0 : i32
    %c0_i32_0 = arith.constant 0 : i32
    %c0_i32_1 = arith.constant 0 : i32
    return %c0_i32, %c0_i32_0 : i32, i32
  }
  func.func @transform_4(%arg0: i32, %arg1: i32) -> (i32, i32) {
    %c0_i32 = arith.constant 0 : i32
    %c0_i32_0 = arith.constant 0 : i32
    %c0_i32_1 = arith.constant 0 : i32
    return %c0_i32, %c0_i32_0 : i32, i32
  }
  func.func @transform_5(%arg0: i32, %arg1: i32) -> (i32, i32) {
    %c0_i32 = arith.constant 0 : i32
    %c0_i32_0 = arith.constant 0 : i32
    %c0_i32_1 = arith.constant 0 : i32
    return %c0_i32, %c0_i32_0 : i32, i32
  }
  func.func @transform_6(%arg0: i32, %arg1: i32) -> (i32, i32) {
    %c0_i32 = arith.constant 0 : i32
    %c0_i32_0 = arith.constant 0 : i32
    %c0_i32_1 = arith.constant 0 : i32
    return %c0_i32, %c0_i32_0 : i32, i32
  }
  func.func @transform_7(%arg0: i32, %arg1: i32) -> (i32, i32, i32) {
    %c0_i32 = arith.constant 0 : i32
    %c0_i32_0 = arith.constant 0 : i32
    return %arg0, %c0_i32, %arg1 : i32, i32, i32
  }
}

</mosaic_0001>

<llo_original>
// kernel: tpu_custom_call.1
$region0: #{tpu_custom_call.1}
  #allocation0 [shape = 'u32[]', space=smem, size = 0x4, offset = 0x4, fixed_abs, tag = 'smem constant byte address 0x4 - core index']
  #allocation1 [shape = 'u32[72,128]{1,0:T(1,128)}', space=vmem, size = 0x9000, scoped, tag = 'internal scratch']
  #allocation2 [shape = 'f32[1,1]{1,0:T(1,128)S(1)}', space=vmem, size = 0x200, scoped, tag = 'scoped memory for tpu_custom_call.1']
  %s0 = inlined_call_operand.vmem [shape: f32[2,4,256], index: 0, kind: input, shape index: {}]
  %s1 = inlined_call_operand.hbm [shape: f32[2,4,256], index: 1, kind: input, shape index: {}]
  %s2 = inlined_call_operand.vmem [shape: bf16[8,4], index: 2, kind: input, shape index: {}]
  %s3 = inlined_call_operand.vmem [shape: bf16[8,4], index: 3, kind: input, shape index: {}]
  %s4 = inlined_call_operand.vmem [shape: f32[8,1], index: 4, kind: input, shape index: {}]
  %s5 = inlined_call_operand.vmem [shape: f32[8,1], index: 5, kind: input, shape index: {}]
  %s6 = inlined_call_operand.<no memory space> [shape: f32[1,1], index: 6, kind: input, shape index: {}]
  %s7 = inlined_call_operand.hbm [shape: bf16[2,4,256], index: 7, kind: output, shape index: {}]
  %s8 = sld [smem:[#allocation0]]
  $region65: #{tpu_custom_call.1} parent=0
    _
  %s10 = ssub.s32 1, %s8
  %s11 = scalar_select 0, %s10, %s8
  %v12 = vstv %s6
  %13 = vst [vmem:[#allocation2] sm:$0x1] %v12
  $region1: #{tpu_custom_call.1} parent=0
    #allocation3 [shape = 'u8[8192]{0}', space=vmem, size = 0x2000, scoped, tag = 'input window, operand 1']
    #allocation4 [shape = 's32[2]{0}', space=sflag, size = 0x8, scoped, tag = 'scoped memory for tpu_custom_call.1']
    #allocation5 [shape = 's32[2]{0}', space=sflag, size = 0x8, scoped, tag = 'scoped memory for tpu_custom_call.1']
    #allocation6 [shape = 'u8[4096]{0}', space=vmem, size = 0x1000, scoped, tag = 'output window, operand 0']
    %14 = vsyncpa [#allocation4], 0
    %s15 = scalar_lea.sflag [#allocation4], 1
    %16 = vsyncpa %s15, 0
    %17 = vsyncpa [#allocation5], 0
    %s18 = scalar_lea.sflag [#allocation5], 1
    %19 = vsyncpa %s18, 0
    loop: start=0, step=1, limit=4
    $region2: #{tpu_custom_call.1} parent=1 // loop_pre_header
      _
    $region3: #{tpu_custom_call.1} parent=1 // loop_header
      %s21 = sphi 0, %s25
      %p22 = scmp.ge.s32.totalorder %s21, 4
      %s28 = sphi 0, %s40
      %s29 = sphi 0, %s36
      %s30 = sphi 0, %s28
      %s31 = sphi 0, %s29
      %s32 = sphi 0, %s30
      %s33 = sphi 0, %s31
      %s45 = sphi 0, %s47
      %s48 = sphi 0, %s45
      %s49 = sphi 0, %s48
      %s65 = sphi 0, %s49
      %s73 = sphi 0, %s75
      %s76 = sphi 0, %s73
      %s77 = sphi 0, %s76
      %s93 = sphi 0, %s77
      %s97 = sphi 0, %s97
      %s99 = sphi 0, %s97
      %s100 = sphi 0, %s99
      %s114 = sphi 0, %s100
      %s118 = sphi 0, %s118
      %s120 = sphi 0, %s118
      %s121 = sphi 0, %s120
      %s135 = sphi 0, %s121
      %s139 = sphi 0, %s139
      %s141 = sphi 0, %s139
      %s142 = sphi 0, %s141
      %s156 = sphi 0, %s142
      %s160 = sphi 0, %s160
      %s162 = sphi 0, %s160
      %s163 = sphi 0, %s162
      %s177 = sphi 0, %s163
      %s181 = sphi 0, %s181
      %s183 = sphi 0, %s181
      %s184 = sphi 0, %s183
      %s198 = sphi 0, %s184
      %s206 = sphi 0, %s208
      %s209 = sphi 0, %s206
      %s210 = sphi 0, %s209
      %s226 = sphi 0, %s210
    $region4: #{tpu_custom_call.1} parent=1 // loop_header_branch
      %24 = sbr.rel (%p22) target = $region8
    $region5: #{tpu_custom_call.1} parent=1 // loop_body
      %s26 = ssub.s32 %s21, 1
      %s27 = ssub.s32 %s21, 2
      %s34 = sadd.s32 1, %s29
      %p35 = scmp.ge.s32.totalorder %s34, 1
      %s36 = scalar_select %p35, 0, %s34
      %s37 = sadd.s32 1, %s28
      %s38 = scalar_select %p35, %s37, %s28
      %p39 = scmp.ge.s32.totalorder %s38, 2
      %s40 = scalar_select %p39, 0, %s38
      %s41 = ssub.s32 %s28, %s40
      %s42 = ssub.s32 %s29, %s36
      %s43 = sor.u32 %s41, %s42
      %p44 = scmp.eq.s32.totalorder %s43, 0
      %s46 = sadd.s32 %s45, 1
      %s47 = scalar_select %p44, %s45, %s46
      %p50 = pneg %p44
      %p51 = scmp.eq.s32.totalorder %s21, 1
      %p52 = por %p50, %p51
      %p53 = scmp.ne.s32.totalorder %s45, %s48
      %p54 = scmp.eq.s32.totalorder %s21, 0
      %p55 = por %p53, %p54
      %p56 = scmp.ne.s32.totalorder %s45, %s48
      %p57 = scmp.eq.s32.totalorder %s26, 1
      %p58 = por %p56, %p57
      %p59 = scmp.ne.s32.totalorder %s48, %s49
      %p60 = scmp.eq.s32.totalorder %s26, 0
      %p61 = por %p59, %p60
      %p62 = scmp.ne.s32.totalorder %s48, %s49
      %p63 = scmp.eq.s32.totalorder %s27, 1
      %p64 = por %p62, %p63
      %p66 = scmp.ne.s32.totalorder %s49, %s65
      %p67 = scmp.eq.s32.totalorder %s27, 0
      %p68 = por %p66, %p67
      %s69 = ssub.s32 %s28, %s40
      %s70 = ssub.s32 %s29, %s36
      %s71 = sor.u32 %s69, %s70
      %p72 = scmp.eq.s32.totalorder %s71, 0
      %s74 = sadd.s32 %s73, 1
      %s75 = scalar_select %p72, %s73, %s74
      %p78 = pneg %p72
      %p79 = scmp.eq.s32.totalorder %s21, 1
      %p80 = por %p78, %p79
      %p81 = scmp.ne.s32.totalorder %s73, %s76
      %p82 = scmp.eq.s32.totalorder %s21, 0
      %p83 = por %p81, %p82
      %p84 = scmp.ne.s32.totalorder %s73, %s76
      %p85 = scmp.eq.s32.totalorder %s26, 1
      %p86 = por %p84, %p85
      %p87 = scmp.ne.s32.totalorder %s76, %s77
      %p88 = scmp.eq.s32.totalorder %s26, 0
      %p89 = por %p87, %p88
      %p90 = scmp.ne.s32.totalorder %s76, %s77
      %p91 = scmp.eq.s32.totalorder %s27, 1
      %p92 = por %p90, %p91
      %p94 = scmp.ne.s32.totalorder %s77, %s93
      %p95 = scmp.eq.s32.totalorder %s27, 0
      %p96 = por %p94, %p95
      %s98 = sadd.s32 %s97, 1
      %p101 = scmp.eq.s32.totalorder %s21, 1
      %p102 = scmp.ne.s32.totalorder %s97, %s99
      %p103 = scmp.eq.s32.totalorder %s21, 0
      %p104 = por %p102, %p103
      %p105 = scmp.ne.s32.totalorder %s97, %s99
      %p106 = scmp.eq.s32.totalorder %s26, 1
      %p107 = por %p105, %p106
      %p108 = scmp.ne.s32.totalorder %s99, %s100
      %p109 = scmp.eq.s32.totalorder %s26, 0
      %p110 = por %p108, %p109
      %p111 = scmp.ne.s32.totalorder %s99, %s100
      %p112 = scmp.eq.s32.totalorder %s27, 1
      %p113 = por %p111, %p112
      %p115 = scmp.ne.s32.totalorder %s100, %s114
      %p116 = scmp.eq.s32.totalorder %s27, 0
      %p117 = por %p115, %p116
      %s119 = sadd.s32 %s118, 1
      %p122 = scmp.eq.s32.totalorder %s21, 1
      %p123 = scmp.ne.s32.totalorder %s118, %s120
      %p124 = scmp.eq.s32.totalorder %s21, 0
      %p125 = por %p123, %p124
      %p126 = scmp.ne.s32.totalorder %s118, %s120
      %p127 = scmp.eq.s32.totalorder %s26, 1
      %p128 = por %p126, %p127
      %p129 = scmp.ne.s32.totalorder %s120, %s121
      %p130 = scmp.eq.s32.totalorder %s26, 0
      %p131 = por %p129, %p130
      %p132 = scmp.ne.s32.totalorder %s120, %s121
      %p133 = scmp.eq.s32.totalorder %s27, 1
      %p134 = por %p132, %p133
      %p136 = scmp.ne.s32.totalorder %s121, %s135
      %p137 = scmp.eq.s32.totalorder %s27, 0
      %p138 = por %p136, %p137
      %s140 = sadd.s32 %s139, 1
      %p143 = scmp.eq.s32.totalorder %s21, 1
      %p144 = scmp.ne.s32.totalorder %s139, %s141
      %p145 = scmp.eq.s32.totalorder %s21, 0
      %p146 = por %p144, %p145
      %p147 = scmp.ne.s32.totalorder %s139, %s141
      %p148 = scmp.eq.s32.totalorder %s26, 1
      %p149 = por %p147, %p148
      %p150 = scmp.ne.s32.totalorder %s141, %s142
      %p151 = scmp.eq.s32.totalorder %s26, 0
      %p152 = por %p150, %p151
      %p153 = scmp.ne.s32.totalorder %s141, %s142
      %p154 = scmp.eq.s32.totalorder %s27, 1
      %p155 = por %p153, %p154
      %p157 = scmp.ne.s32.totalorder %s142, %s156
      %p158 = scmp.eq.s32.totalorder %s27, 0
      %p159 = por %p157, %p158
      %s161 = sadd.s32 %s160, 1
      %p164 = scmp.eq.s32.totalorder %s21, 1
      %p165 = scmp.ne.s32.totalorder %s160, %s162
      %p166 = scmp.eq.s32.totalorder %s21, 0
      %p167 = por %p165, %p166
      %p168 = scmp.ne.s32.totalorder %s160, %s162
      %p169 = scmp.eq.s32.totalorder %s26, 1
      %p170 = por %p168, %p169
      %p171 = scmp.ne.s32.totalorder %s162, %s163
      %p172 = scmp.eq.s32.totalorder %s26, 0
      %p173 = por %p171, %p172
      %p174 = scmp.ne.s32.totalorder %s162, %s163
      %p175 = scmp.eq.s32.totalorder %s27, 1
      %p176 = por %p174, %p175
      %p178 = scmp.ne.s32.totalorder %s163, %s177
      %p179 = scmp.eq.s32.totalorder %s27, 0
      %p180 = por %p178, %p179
      %s182 = sadd.s32 %s181, 1
      %p185 = scmp.eq.s32.totalorder %s21, 1
      %p186 = scmp.ne.s32.totalorder %s181, %s183
      %p187 = scmp.eq.s32.totalorder %s21, 0
      %p188 = por %p186, %p187
      %p189 = scmp.ne.s32.totalorder %s181, %s183
      %p190 = scmp.eq.s32.totalorder %s26, 1
      %p191 = por %p189, %p190
      %p192 = scmp.ne.s32.totalorder %s183, %s184
      %p193 = scmp.eq.s32.totalorder %s26, 0
      %p194 = por %p192, %p193
      %p195 = scmp.ne.s32.totalorder %s183, %s184
      %p196 = scmp.eq.s32.totalorder %s27, 1
      %p197 = por %p195, %p196
      %p199 = scmp.ne.s32.totalorder %s184, %s198
      %p200 = scmp.eq.s32.totalorder %s27, 0
      %p201 = por %p199, %p200
      %s202 = ssub.s32 %s28, %s40
      %s203 = ssub.s32 %s29, %s36
      %s204 = sor.u32 %s202, %s203
      %p205 = scmp.eq.s32.totalorder %s204, 0
      %s207 = sadd.s32 %s206, 1
      %s208 = scalar_select %p205, %s206, %s207
      %p211 = pneg %p205
      %p212 = scmp.eq.s32.totalorder %s21, 1
      %p213 = por %p211, %p212
      %p214 = scmp.ne.s32.totalorder %s206, %s209
      %p215 = scmp.eq.s32.totalorder %s21, 0
      %p216 = por %p214, %p215
      %p217 = scmp.ne.s32.totalorder %s206, %s209
      %p218 = scmp.eq.s32.totalorder %s26, 1
      %p219 = por %p217, %p218
      %p220 = scmp.ne.s32.totalorder %s209, %s210
      %p221 = scmp.eq.s32.totalorder %s26, 0
      %p222 = por %p220, %p221
      %p223 = scmp.ne.s32.totalorder %s209, %s210
      %p224 = scmp.eq.s32.totalorder %s27, 1
      %p225 = por %p223, %p224
      %p227 = scmp.ne.s32.totalorder %s210, %s226
      %p228 = scmp.eq.s32.totalorder %s27, 0
      %p229 = por %p227, %p228
      %p230 = scmp.le.s32.totalorder 1, %s21
      %p231 = scmp.lt.s32.totalorder %s21, 3
      %p232 = pnand %p230, %p231
      %p233 = pneg %p232
      // Predicated region
      $region9: #{tpu_custom_call.1} parent=5 // pred_check
        _
      $region10: #{tpu_custom_call.1} parent=5 // pred_check_branch
        %235 = sbr.rel (%p232) target = $region12
      $region11: #{tpu_custom_call.1} parent=5 // pred_region
        %s236 = ssub.s32 %s21, 1
        // Predicated region
        $region13: #{tpu_custom_call.1} parent=11 // pred_check
          %p237 = pneg %p110
        $region14: #{tpu_custom_call.1} parent=11 // pred_check_branch
          %239 = sbr.rel (%p237) target = $region16
        $region15: #{tpu_custom_call.1} parent=11 // pred_region
          _
        $region16: #{tpu_custom_call.1} parent=11 // pred_fallthru
          _
        // Predicated region
        $region17: #{tpu_custom_call.1} parent=11 // pred_check
          %p240 = pneg %p131
        $region18: #{tpu_custom_call.1} parent=11 // pred_check_branch
          %242 = sbr.rel (%p240) target = $region20
        $region19: #{tpu_custom_call.1} parent=11 // pred_region
          _
        $region20: #{tpu_custom_call.1} parent=11 // pred_fallthru
          _
        // Predicated region
        $region21: #{tpu_custom_call.1} parent=11 // pred_check
          %p243 = pneg %p152
        $region22: #{tpu_custom_call.1} parent=11 // pred_check_branch
          %245 = sbr.rel (%p243) target = $region24
        $region23: #{tpu_custom_call.1} parent=11 // pred_region
          _
        $region24: #{tpu_custom_call.1} parent=11 // pred_fallthru
          _
        // Predicated region
        $region25: #{tpu_custom_call.1} parent=11 // pred_check
          %p246 = pneg %p173
        $region26: #{tpu_custom_call.1} parent=11 // pred_check_branch
          %248 = sbr.rel (%p246) target = $region28
        $region27: #{tpu_custom_call.1} parent=11 // pred_region
          _
        $region28: #{tpu_custom_call.1} parent=11 // pred_fallthru
          _
        // Predicated region
        $region29: #{tpu_custom_call.1} parent=11 // pred_check
          %p249 = pneg %p194
        $region30: #{tpu_custom_call.1} parent=11 // pred_check_branch
          %251 = sbr.rel (%p249) target = $region32
        $region31: #{tpu_custom_call.1} parent=11 // pred_region
          _
        $region32: #{tpu_custom_call.1} parent=11 // pred_fallthru
          _
      $region12: #{tpu_custom_call.1} parent=5 // pred_fallthru
        _
      %p252 = scmp.lt.s32.totalorder %s21, 2
      // Predicated region
      $region33: #{tpu_custom_call.1} parent=5 // pred_check
        %p253 = pneg %p252
      $region34: #{tpu_custom_call.1} parent=5 // pred_check_branch
        %255 = sbr.rel (%p253) target = $region36
      $region35: #{tpu_custom_call.1} parent=5 // pred_region
        // Predicated region
        $region37: #{tpu_custom_call.1} parent=35 // pred_check
          %p256 = pneg %p55
        $region38: #{tpu_custom_call.1} parent=35 // pred_check_branch
          %258 = sbr.rel (%p256) target = $region40
        $region39: #{tpu_custom_call.1} parent=35 // pred_region
          %s259 = smul.u32 2, %s29
          %p260 = scmp.lt.s32.totalorder %s28, 1
          %s261 = scalar_select %p260, %s28, 1
          %p262 = scmp.lt.s32.totalorder %s259, 1
          %s263 = scalar_select %p262, %s259, 1
          %s264 = smul.addr %s261, 2
          %s265 = sadd.s32 %s263, %s264
          %s266 = smul.addr %s265, 4
          %s267 = scalar_lea.vmem %s0, %s266
          %s268 = smul.u32 2, %s29
        $region40: #{tpu_custom_call.1} parent=35 // pred_fallthru
          _
        // Predicated region
        $region41: #{tpu_custom_call.1} parent=35 // pred_check
          %p269 = pneg %p83
        $region42: #{tpu_custom_call.1} parent=35 // pred_check_branch
          %271 = sbr.rel (%p269) target = $region44
        $region43: #{tpu_custom_call.1} parent=35 // pred_region
          %s272 = sand.u32 %s73, 1
          %s273 = scalar_lea.sflag [#allocation4], %s272
          %s274 = sand.u32 %s73, 1
          %s275 = smul.addr %s274, 8
          %s276 = scalar_lea.vmem [#allocation3], %s275
          %s277 = smul.u32 2, %s29
          %279 = vsyncadd %s273, 0
          %s280 = smul.addr %s28, 2
          %s281 = sadd.s32 %s277, %s280
          %s282 = smul.addr %s281, 4
          %s283 = scalar_lea.hbm %s1, %s282
          %s285 = sshll.u32 %s283, 4
          %s286 = int_to_ptr.hbm [resolvable:$true] %s285
          %s287 = sshll.u32 %s276, 4
          %s288 = int_to_ptr.vmem [resolvable:$true] %s287
          %290 = dma.hbm_to_vmem [thread:$0]  %s286, 128, %s288, %s273
        $region44: #{tpu_custom_call.1} parent=35 // pred_fallthru
          _
      $region36: #{tpu_custom_call.1} parent=5 // pred_fallthru
        _
      %p291 = scmp.le.s32.totalorder 1, %s21
      %p292 = scmp.lt.s32.totalorder %s21, 3
      %p293 = pnand %p291, %p292
      %p294 = pneg %p293
      // Predicated region
      $region45: #{tpu_custom_call.1} parent=5 // pred_check
        _
      $region46: #{tpu_custom_call.1} parent=5 // pred_check_branch
        %296 = sbr.rel (%p293) target = $region48
      $region47: #{tpu_custom_call.1} parent=5 // pred_region
        %s297 = ssub.s32 %s21, 1
        %s298 = sand.u32 %s76, 1
        %s299 = scalar_lea.sflag [#allocation4], %s298
        %s300 = sand.u32 %s76, 1
        %s301 = smul.addr %s300, 8
        %s302 = scalar_lea.vmem [#allocation3], %s301
        // Predicated region
        $region49: #{tpu_custom_call.1} parent=47 // pred_check
          %p303 = pneg %p89
        $region50: #{tpu_custom_call.1} parent=47 // pred_check_branch
          %305 = sbr.rel (%p303) target = $region52
        $region51: #{tpu_custom_call.1} parent=47 // pred_region
          %307 = dma.done %s299, 128
        $region52: #{tpu_custom_call.1} parent=47 // pred_fallthru
          _
        %s308 = smul.u32 2, %s31
        %p309 = scmp.lt.s32.totalorder %s30, 1
        %s310 = scalar_select %p309, %s30, 1
        %p311 = scmp.lt.s32.totalorder %s308, 1
        %s312 = scalar_select %p311, %s308, 1
        %s313 = smul.addr %s310, 2
        %s314 = sadd.s32 %s312, %s313
        %s315 = smul.addr %s314, 4
        %s316 = scalar_lea.vmem %s0, %s315
        %p317 = pneg %p61
        %p318 = pneg %p58
        %s319 = sand.u32 %s76, 1
        %s320 = scalar_lea.sflag [#allocation4], %s319
        %s321 = sand.u32 %s76, 1
        %s322 = smul.addr %s321, 8
        %s323 = scalar_lea.vmem [#allocation3], %s322
        %p324 = pneg %p89
        %p325 = pneg %p86
        %p326 = pneg %p110
        %p327 = pneg %p107
        %p328 = pneg %p131
        %p329 = pneg %p128
        %p330 = pneg %p152
        %p331 = pneg %p149
        %p332 = pneg %p173
        %p333 = pneg %p170
        %p334 = pneg %p194
        %p335 = pneg %p191
        %p336 = pneg %p222
        %p337 = pneg %p219
        %s338 = sand.u32 %s209, 1
        %s339 = scalar_lea.sflag [#allocation5], %s338
        %s340 = sand.u32 %s209, 1
        %s341 = smul.addr %s340, 4
        %s342 = scalar_lea.vmem [#allocation6], %s341
        %s343 = smul.u32 2, %s31
        %p344 = scmp.lt.s32.totalorder %s30, 1
        %s345 = scalar_select %p344, %s30, 1
        %p346 = scmp.lt.s32.totalorder %s343, 1
        %s347 = scalar_select %p346, %s343, 1
        %s348 = smul.addr %s345, 2
        %s349 = sadd.s32 %s347, %s348
        %s350 = smul.addr %s349, 4
        %s351 = scalar_lea.vmem %s0, %s350
        %s352 = smul.u32 2, %s31
        %s353 = smul.u32 2, %s31
        %s354 = smul.u32 2, %s31
        %v356 = vld [vmem:[%s302] sm:$0xff]
        %v357 = vld [vmem:[%s351] sm:$0xff]
        %v358 = vld [vmem:[%s2] sm:$0xf]
        %360 = vst [vmem:[#allocation1] ss:$2 sm:$0xff] %v357
        %v361 = vld.sshfl [vmem:[#allocation1] sm:$0xff pattern:$0x75316420]
        %v362 = vld.sshfl [vmem:[#allocation1 + $0x8] sm:$0xff pattern:$0x75316420]
        %v365 = vpack.c.bf16 %v361, %v361
        %v366 = vpack.c.bf16 %v362, %v362
        %v367 = vld [vmem:[%s3] sm:$0xf]
        %369 = vst [vmem:[#allocation1] ss:$2 sm:$0xff] %v356
        %v370 = vld.sshfl [vmem:[#allocation1] sm:$0xff pattern:$0x75316420]
        %v371 = vld.sshfl [vmem:[#allocation1 + $0x8] sm:$0xff pattern:$0x75316420]
        %v374 = vpack.c.bf16 %v370, %v370
        %v375 = vpack.c.bf16 %v371, %v371
        %vm376 = vcmask 31744
        %v378 = vsel %vm376, %v367, 0
        %vm380 = vcmask 1041408
        %v382 = vsel %vm380, %v374, 0
        %v385 = vsel %vm380, %v375, 0
        %387 = vmatpush.bf16.msra.mxu0 0
        %388 = vmatpush.bf16.msra.mxu0 0
        %389 = vmatpush.bf16.msra.mxu0 0
        %390 = vmatpush.bf16.msra.mxu0 0
        %391 = vmatpush.bf16.msra.mxu0 0
        %392 = vmatpush.bf16.msra.mxu0 0
        %393 = vmatpush.bf16.msra.mxu0 0
        %394 = vmatpush.bf16.msra.mxu0 %v382
        %395 = vmatmul.bf16.gmra.mxu0 %v378
        %v396 = vpop.f32.mrf.mxu0
        %v397 = vadd.f32 0.0, %v396
        %v398 = vpop.f32.mrf.mxu0
        %399 = vdwg.mxu0
        %400 = vmatpush.bf16.msra.mxu0 0
        %401 = vmatpush.bf16.msra.mxu0 0
        %402 = vmatpush.bf16.msra.mxu0 0
        %403 = vmatpush.bf16.msra.mxu0 0
        %404 = vmatpush.bf16.msra.mxu0 0
        %405 = vmatpush.bf16.msra.mxu0 0
        %406 = vmatpush.bf16.msra.mxu0 0
        %407 = vmatpush.bf16.msra.mxu0 %v385
        %408 = vmatmul.bf16.gmra.mxu0 %v378
        %v409 = vpop.f32.mrf.mxu0
        %v410 = vadd.f32 0.0, %v409
        %v411 = vpop.f32.mrf.mxu0
        %412 = vdwg.mxu0
        %v414 = vsel %vm376, %v358, 0
        %v417 = vsel %vm380, %v365, 0
        %v420 = vsel %vm380, %v366, 0
        %422 = vmatpush.bf16.msra.mxu0 0
        %423 = vmatpush.bf16.msra.mxu0 0
        %424 = vmatpush.bf16.msra.mxu0 0
        %425 = vmatpush.bf16.msra.mxu0 0
        %426 = vmatpush.bf16.msra.mxu0 0
        %427 = vmatpush.bf16.msra.mxu0 0
        %428 = vmatpush.bf16.msra.mxu0 0
        %429 = vmatpush.bf16.msra.mxu0 %v417
        %430 = vmatmul.bf16.gmra.mxu0 %v414
        %v431 = vpop.f32.mrf.mxu0
        %v432 = vadd.f32 %v397, %v431
        %v433 = vpop.f32.mrf.mxu0
        %434 = vdwg.mxu0
        %435 = vmatpush.bf16.msra.mxu0 0
        %436 = vmatpush.bf16.msra.mxu0 0
        %437 = vmatpush.bf16.msra.mxu0 0
        %438 = vmatpush.bf16.msra.mxu0 0
        %439 = vmatpush.bf16.msra.mxu0 0
        %440 = vmatpush.bf16.msra.mxu0 0
        %441 = vmatpush.bf16.msra.mxu0 0
        %442 = vmatpush.bf16.msra.mxu0 %v420
        %443 = vmatmul.bf16.gmra.mxu0 %v414
        %v444 = vpop.f32.mrf.mxu0
        %v445 = vadd.f32 %v410, %v444
        %v446 = vpop.f32.mrf.mxu0
        %447 = vdwg.mxu0
        %v448 = vld [vmem:[%s4] sm:$0xff]
        %450 = vset.pattern.permute.xlu0 0
        %451 = vperm.xlu0 %450, %v448
        %v452 = vpop.permute.xlu0 %451
        %v454 = vadd.f32 %v432, %v452
        %v455 = vadd.f32 %v445, %v452
        %v456 = vmax.f32 %v454, 0.0
        %v457 = vmax.f32 %v455, 0.0
        %v458 = vld [vmem:[%s5] sm:$0xff]
        %460 = vset.pattern.permute.xlu0 0
        %461 = vperm.xlu0 %460, %v458
        %v462 = vpop.permute.xlu0 %461
        %v464 = vmul.f32 %v456, %v462
        %v465 = vmul.f32 %v457, %v462
        %v466 = vrot.slane %v464, 4
        %v467 = vadd.f32 %v464, %v466
        %v468 = vrot.slane %v467, 2
        %v469 = vadd.f32 %v467, %v468
        %v470 = vrot.slane %v469, 1
        %v471 = vadd.f32 %v469, %v470
        %v472 = vrot.slane %v465, 4
        %v473 = vadd.f32 %v465, %v472
        %v474 = vrot.slane %v473, 2
        %v475 = vadd.f32 %v473, %v474
        %v476 = vrot.slane %v475, 1
        %v477 = vadd.f32 %v475, %v476
        %v478 = vld [vmem:[#allocation2] sm:$0x1]
        %480 = vset.pattern.permute.xlu0 0
        %481 = vperm.xlu0 %480, %v478
        %v482 = vpop.permute.xlu0 %481
        %v484 = vperm.slane %v482, 0
        %v485 = vadd.f32 %v471, %v484
        %v486 = vadd.f32 %v477, %v484
        %v487 = vxor.u32 %v485, 2147483648
        %v488 = vxor.u32 %v486, 2147483648
        %v489 = vmul.f32 %v487, 1.442695
        %v490 = vpow.pop %v489
        %v491 = vmul.f32 %v488, 1.442695
        %v492 = vpow.pop %v491
        %v493 = vadd.f32 %v490, 1.0
        %v494 = vadd.f32 %v492, 1.0
        %v495 = vrcp.pop %v493
        %v496 = vmul.f32 %v493, %v495
        %v497 = vsub.f32 1.0, %v496
        %v498 = vmul.f32 %v495, %v497
        %v499 = vadd.f32 %v495, %v498
        %vm500 = vweird.f32 %v493
        %vm501 = vweird.f32 %v495
        %vm502 = vmor %vm500, %vm501
        %v503 = vsel %vm502, %v495, %v499
        %v504 = vand.u32 2147483647, %v493
        %vm505 = vcmp.eq.f32.partialorder %v504, 8.507059e+37
        %v506 = vand.u32 %v493, 2147483648
        %v507 = vor.u32 1.1754944e-38, %v506
        %v508 = vsel %vm505, %v507, %v503
        %v509 = vmul.f32 1.0, %v508
        %v510 = vrcp.pop %v494
        %v511 = vmul.f32 %v494, %v510
        %v512 = vsub.f32 1.0, %v511
        %v513 = vmul.f32 %v510, %v512
        %v514 = vadd.f32 %v510, %v513
        %vm515 = vweird.f32 %v494
        %vm516 = vweird.f32 %v510
        %vm517 = vmor %vm515, %vm516
        %v518 = vsel %vm517, %v510, %v514
        %v519 = vand.u32 2147483647, %v494
        %vm520 = vcmp.eq.f32.partialorder %v519, 8.507059e+37
        %v521 = vand.u32 %v494, 2147483648
        %v522 = vor.u32 1.1754944e-38, %v521
        %v523 = vsel %vm520, %v522, %v518
        %v524 = vmul.f32 1.0, %v523
        %v527 = vrot.slane %v524, 4
        %vm528 = vcmask 1043456
        %v529 = vsel %vm528, %v509, %v527
        %v531 = vmul.f32 %v356, %v529
        %533 = vst [vmem:[#allocation1] ss:$2 sm:$0xff] %v531
        %v534 = vld.sshfl [vmem:[#allocation1] sm:$0xff pattern:$0x75316420]
        %v535 = vld.sshfl [vmem:[#allocation1 + $0x8] sm:$0xff pattern:$0x75316420]
        %v538 = vpack.c.bf16 %v535, %v534
        %v540 = vrot.slane %v538, 2
        %v543 = vsel %vm380, %v538, %v540
        %545 = vst [vmem:[%s342] sm:$0xf] %v543
        %s546 = sand.u32 %s209, 1
        %s547 = scalar_lea.sflag [#allocation5], %s546
        %s548 = sand.u32 %s209, 1
        %s549 = smul.addr %s548, 4
        %s550 = scalar_lea.vmem [#allocation6], %s549
        // Predicated region
        $region53: #{tpu_custom_call.1} parent=47 // pred_check
          %p551 = pneg %p219
        $region54: #{tpu_custom_call.1} parent=47 // pred_check_branch
          %553 = sbr.rel (%p551) target = $region56
        $region55: #{tpu_custom_call.1} parent=47 // pred_region
          %s554 = smul.u32 2, %s31
          %556 = vsyncadd %s547, 0
          %s557 = smul.addr %s30, 2
          %s558 = sadd.s32 %s554, %s557
          %s559 = smul.addr %s558, 2
          %s560 = scalar_lea.hbm %s7, %s559
          %s562 = sshll.u32 %s550, 4
          %s563 = int_to_ptr.vmem [resolvable:$true] %s562
          %s564 = sshll.u32 %s560, 4
          %s565 = int_to_ptr.hbm [resolvable:$true] %s564
          %567 = dma.vmem_to_hbm [thread:$0]  %s563, 64, %s565, %s547
        $region56: #{tpu_custom_call.1} parent=47 // pred_fallthru
          _
      $region48: #{tpu_custom_call.1} parent=5 // pred_fallthru
        _
      %p568 = scmp.le.s32.totalorder 2, %s21
      // Predicated region
      $region57: #{tpu_custom_call.1} parent=5 // pred_check
        %p569 = pneg %p568
      $region58: #{tpu_custom_call.1} parent=5 // pred_check_branch
        %571 = sbr.rel (%p569) target = $region60
      $region59: #{tpu_custom_call.1} parent=5 // pred_region
        %s572 = ssub.s32 %s21, 2
        // Predicated region
        $region61: #{tpu_custom_call.1} parent=59 // pred_check
          %p573 = pneg %p225
        $region62: #{tpu_custom_call.1} parent=59 // pred_check_branch
          %575 = sbr.rel (%p573) target = $region64
        $region63: #{tpu_custom_call.1} parent=59 // pred_region
          %s576 = sand.u32 %s210, 1
          %s577 = scalar_lea.sflag [#allocation5], %s576
          %s578 = sand.u32 %s210, 1
          %s579 = smul.addr %s578, 4
          %s580 = scalar_lea.vmem [#allocation6], %s579
          %582 = dma.done %s577, 64
        $region64: #{tpu_custom_call.1} parent=59 // pred_fallthru
          _
      $region60: #{tpu_custom_call.1} parent=5 // pred_fallthru
        _
    $region6: #{tpu_custom_call.1} parent=1 // loop_footer
      %s25 = sadd.s32 1, %s21
    $region7: #{tpu_custom_call.1} parent=1 // loop_footer_branch
      %20 = sbr.rel target = $region3
    $region8: #{tpu_custom_call.1} parent=1 // loop_exit
      _
    %583 = vsyncpa [#allocation4], 1
    %s584 = scalar_lea.sflag [#allocation4], 1
    %585 = vsyncpa %s584, 1
    %586 = vsyncpa [#allocation5], 1
    %s587 = scalar_lea.sflag [#allocation5], 1
    %588 = vsyncpa %s587, 1

</llo_original>
